<compile_context>
chip_gen: v7x
topology: tpu7x:2x2x1
jax: 0.10.0
libtpu: 0.0.40
codegen_flags: <defaults>
</compile_context>

<pallas_src>
import math
import functools

import jax
import jax.numpy as jnp
from jax.experimental import pallas as pl
from jax.experimental.pallas import tpu as pltpu


def _round_up(x: int, m: int) -> int:
    return ((x + m - 1) // m) * m


def _flash_attn_kernel(scale, vl_ref, q_ref, k_ref, v_ref, o_ref,
                       m_sc, l_sc, acc_sc):
    """One grid step = (batch b, q-tile qi, k-tile ki); k is the reduction axis.

    vl_ref : SMEM (B,)        int32  -- scalar-prefetched per-batch valid lengths
    q_ref  : VMEM (1, tq, Dp)        -- native dtype
    k_ref  : VMEM (1, tk, Dp)
    v_ref  : VMEM (1, tk, Dvp)
    o_ref  : VMEM (1, tq, Dvp)
    m_sc   : VMEM (tq, 1)     f32    -- running row max
    l_sc   : VMEM (tq, 1)     f32    -- running softmax denominator
    acc_sc : VMEM (tq, Dvp)   f32    -- running (unnormalized) output
    """
    b = pl.program_id(0)
    ki = pl.program_id(2)
    nk = pl.num_programs(2)
    tk = k_ref.shape[1]

    @pl.when(ki == 0)
    def _init():
        m_sc[...] = jnp.full_like(m_sc, -jnp.inf)
        l_sc[...] = jnp.zeros_like(l_sc)
        acc_sc[...] = jnp.zeros_like(acc_sc)

    vl = vl_ref[b]
    k_start = ki * tk

    # Skip K tiles that are entirely masked (their softmax weight underflows to
    # exactly 0 in f32 anyway). Always process tile 0 so the running state is
    # well-defined.
    # TODO(synk): a row with valid_len == 0 degrades to uniform weights over the
    # first K tile only (reference uses all K) — degenerate case.
    @pl.when((k_start < vl) | (ki == 0))
    def _compute():
        q = q_ref[0] * scale                       # fold 1/sqrt(d) into q
        k = k_ref[0]
        # scores = q @ k^T without materializing a transpose: contract last dims.
        s = jax.lax.dot_general(q, k, (((1,), (1,)), ((), ())),
                                preferred_element_type=jnp.float32)  # (tq, tk)

        # masked softmax: positions >= valid_len get -1e6 (matches d2l).
        col = k_start + jax.lax.broadcasted_iota(jnp.int32, s.shape, 1)
        s = jnp.where(col < vl, s, jnp.float32(-1e6))

        # online (flash) softmax update
        m_prev = m_sc[...]
        m_new = jnp.maximum(m_prev, jnp.max(s, axis=-1, keepdims=True))
        alpha = jnp.exp(m_prev - m_new)
        p = jnp.exp(s - m_new)                      # (tq, tk) f32
        l_sc[...] = alpha * l_sc[...] + jnp.sum(p, axis=-1, keepdims=True)
        acc_sc[...] = alpha * acc_sc[...] + jnp.dot(
            p.astype(v_ref.dtype), v_ref[0], preferred_element_type=jnp.float32)
        m_sc[...] = m_new

    @pl.when(ki == nk - 1)
    def _store():
        inv_l = pl.reciprocal(l_sc[...], approx=True)   # EUP slot, ~free
        o_ref[0] = (acc_sc[...] * inv_l).astype(o_ref.dtype)


@jax.jit
def dot_product_attention(query, key, value, valid_len=None):
    """Pallas implementation of d2l DotProductAttention.forward (dropout p=0)."""
    B, Q, D = query.shape
    _, K, _ = key.shape
    Dv = value.shape[-1]

    # Lane-dense head dims (multiples of 128); sublane-aligned sequence tiles.
    Dp = _round_up(D, 128)
    Dvp = _round_up(Dv, 128)
    tq = min(256, _round_up(Q, 8))
    tk = min(512, _round_up(K, 8))
    Qp = _round_up(Q, tq)
    Kp = _round_up(K, tk)

    if valid_len is None:
        vl = jnp.full((B,), K, dtype=jnp.int32)   # mask only the K padding
    else:
        vl = valid_len.astype(jnp.int32)          # (B,) per-batch valid length
        # TODO(synk): per-query (B, Q) valid_len form not supported.

    # Zero-pad to tile-aligned, lane-dense shapes; padded K columns are masked
    # via vl, padded Q rows are sliced off below.
    q_p = jnp.pad(query, ((0, 0), (0, Qp - Q), (0, Dp - D)))
    k_p = jnp.pad(key, ((0, 0), (0, Kp - K), (0, Dp - D)))
    v_p = jnp.pad(value, ((0, 0), (0, Kp - K), (0, Dvp - Dv)))

    kernel = functools.partial(_flash_attn_kernel, 1.0 / math.sqrt(D))

    grid_spec = pltpu.PrefetchScalarGridSpec(
        num_scalar_prefetch=1,
        grid=(B, Qp // tq, Kp // tk),
        in_specs=[
            pl.BlockSpec((1, tq, Dp), lambda b, qi, ki, vl_ref: (b, qi, 0)),
            pl.BlockSpec((1, tk, Dp), lambda b, qi, ki, vl_ref: (b, ki, 0)),
            pl.BlockSpec((1, tk, Dvp), lambda b, qi, ki, vl_ref: (b, ki, 0)),
        ],
        out_specs=pl.BlockSpec((1, tq, Dvp), lambda b, qi, ki, vl_ref: (b, qi, 0)),
        scratch_shapes=[
            pltpu.VMEM((tq, 1), jnp.float32),     # running max
            pltpu.VMEM((tq, 1), jnp.float32),     # running denom
            pltpu.VMEM((tq, Dvp), jnp.float32),   # running accumulator
        ],
    )

    out_p = pl.pallas_call(
        kernel,
        out_shape=jax.ShapeDtypeStruct((B, Qp, Dvp), query.dtype),
        grid_spec=grid_spec,
        compiler_params=pltpu.CompilerParams(
            dimension_semantics=("parallel", "parallel", "arbitrary"),
            vmem_limit_bytes=32 * 1024 * 1024,
        ),
    )(vl, q_p, k_p, v_p)

    return out_p[:, :Q, :Dv]


def _reference(query, key, value, valid_len=None):
    """Pure-JAX reference mirroring the PyTorch module semantics."""
    d = query.shape[-1]
    scores = jnp.einsum("bqd,bkd->bqk", query, key) / math.sqrt(d)
    if valid_len is not None:
        col = jnp.arange(scores.shape[-1])[None, None, :]
        mask = col < valid_len[:, None, None]
        scores = jnp.where(mask, scores, -1e6)
    w = jax.nn.softmax(scores, axis=-1)
    return jnp.einsum("bqk,bkd->bqd", w, value)


if __name__ == "__main__":
    key0 = jax.random.PRNGKey(0)
    kq, kk, kv = jax.random.split(key0, 3)

    # --- small shape consistent with the module ---
    B, Q, K, D, Dv = 2, 8, 8, 32, 32
    query = jax.random.normal(kq, (B, Q, D), dtype=jnp.float32)
    key_ = jax.random.normal(kk, (B, K, D), dtype=jnp.float32)
    value = jax.random.normal(kv, (B, K, Dv), dtype=jnp.float32)
    valid_len = jnp.array([3, 6], dtype=jnp.int32)

    out = jax.block_until_ready(dot_product_attention(query, key_, value, valid_len))
    ref = _reference(query, key_, value, valid_len)
    assert jnp.allclose(out, ref, atol=2e-3, rtol=2e-3), "mismatch (masked)"

    out2 = jax.block_until_ready(dot_product_attention(query, key_, value, None))
    ref2 = _reference(query, key_, value, None)
    assert jnp.allclose(out2, ref2, atol=2e-3, rtol=2e-3), "mismatch (unmasked)"

    # --- multi K-tile case: exercises flash accumulation + masked-tile skip ---
    kq2, kk2, kv2 = jax.random.split(jax.random.PRNGKey(1), 3)
    B2, Q2, K2, D2, Dv2 = 2, 16, 600, 64, 64
    q2 = jax.random.normal(kq2, (B2, Q2, D2), dtype=jnp.float32)
    k2 = jax.random.normal(kk2, (B2, K2, D2), dtype=jnp.float32)
    v2 = jax.random.normal(kv2, (B2, K2, Dv2), dtype=jnp.float32)
    vl2 = jnp.array([100, 550], dtype=jnp.int32)

    out3 = jax.block_until_ready(dot_product_attention(q2, k2, v2, vl2))
    ref3 = _reference(q2, k2, v2, vl2)
    assert jnp.allclose(out3, ref3, atol=2e-3, rtol=2e-3), "mismatch (multi-tile)"

    print("KERNEL_OK")
</pallas_src>

<mosaic_0001>
module attributes {stable_mosaic.version = 11 : i64} {
  func.func @_flash_attn_kernel(%arg0: i32, %arg1: i32, %arg2: i32, %arg3: memref<2xi32, #tpu.memory_space<smem>>, %arg4: memref<1x8x128xf32, #tpu.memory_space<vmem>>, %arg5: memref<1x8x128xf32, #tpu.memory_space<vmem>>, %arg6: memref<1x8x128xf32, #tpu.memory_space<vmem>>, %arg7: memref<1x8x128xf32, #tpu.memory_space<vmem>>, %arg8: memref<8x1xf32, #tpu.memory_space<vmem>>, %arg9: memref<8x1xf32, #tpu.memory_space<vmem>>, %arg10: memref<8x128xf32, #tpu.memory_space<vmem>>) attributes {dimension_semantics = [#tpu.dimension_semantics<parallel>, #tpu.dimension_semantics<parallel>, #tpu.dimension_semantics<arbitrary>], iteration_bounds = array<i64: 2, 1, 1>, scalar_prefetch = 1 : i64, scratch_operands = 3 : i64, tpu.core_type = #tpu.core_type<tc>, window_params = [{transform_indices = @transform_0, window_bounds = array<i64: 1, 8, 128>}, {transform_indices = @transform_1, window_bounds = array<i64: 1, 8, 128>}, {transform_indices = @transform_2, window_bounds = array<i64: 1, 8, 128>}, {transform_indices = @transform_3, window_bounds = array<i64: 1, 8, 128>}]} {
    %c0_i32 = arith.constant 0 : i32
    %0 = arith.cmpi eq, %arg2, %c0_i32 : i32
    %1 = arith.extui %0 : i1 to i32
    %c0_i32_0 = arith.constant 0 : i32
    %2 = arith.cmpi ne, %1, %c0_i32_0 : i32
    scf.if %2 {
      %cst = arith.constant 0xFF800000 : f32
      %14 = vector.broadcast %cst : f32 to vector<8x1xf32>
      %c0 = arith.constant 0 : index
      %c0_5 = arith.constant 0 : index
      %15 = vector.load %arg8[%c0, %c0_5] : memref<8x1xf32, #tpu.memory_space<vmem>>, vector<8x1xf32>
      tpu.vector_store %arg8[%c0, %c0_5], %14 {strides = array<i32>} : memref<8x1xf32, #tpu.memory_space<vmem>>, vector<8x1xf32>,
      %cst_6 = arith.constant 0.000000e+00 : f32
      %16 = vector.broadcast %cst_6 : f32 to vector<8x1xf32>
      %c0_7 = arith.constant 0 : index
      %c0_8 = arith.constant 0 : index
      %17 = vector.load %arg9[%c0_7, %c0_8] : memref<8x1xf32, #tpu.memory_space<vmem>>, vector<8x1xf32>
      tpu.vector_store %arg9[%c0_7, %c0_8], %16 {strides = array<i32>} : memref<8x1xf32, #tpu.memory_space<vmem>>, vector<8x1xf32>,
      %cst_9 = arith.constant 0.000000e+00 : f32
      %18 = vector.broadcast %cst_9 : f32 to vector<8x128xf32>
      %c0_10 = arith.constant 0 : index
      %c0_11 = arith.constant 0 : index
      %19 = vector.load %arg10[%c0_10, %c0_11] : memref<8x128xf32, #tpu.memory_space<vmem>>, vector<8x128xf32>
      tpu.vector_store %arg10[%c0_10, %c0_11], %18 {strides = array<i32>} : memref<8x128xf32, #tpu.memory_space<vmem>>, vector<8x128xf32>,
    } else {
    }
    %3 = arith.index_cast %arg0 : i32 to index
    %4 = memref.load %arg3[%3] : memref<2xi32, #tpu.memory_space<smem>>
    %c8_i32 = arith.constant 8 : i32
    %5 = arith.muli %arg2, %c8_i32 : i32
    %6 = arith.cmpi slt, %5, %4 : i32
    %c0_i32_1 = arith.constant 0 : i32
    %7 = arith.cmpi eq, %arg2, %c0_i32_1 : i32
    %8 = arith.ori %6, %7 : i1
    %9 = arith.extui %8 : i1 to i32
    %c0_i32_2 = arith.constant 0 : i32
    %10 = arith.cmpi ne, %9, %c0_i32_2 : i32
    scf.if %10 {
      %c0 = arith.constant 0 : index
      %c0_5 = arith.constant 0 : index
      %c0_6 = arith.constant 0 : index
      %14 = vector.load %arg4[%c0, %c0_5, %c0_6] : memref<1x8x128xf32, #tpu.memory_space<vmem>>, vector<1x8x128xf32>
      %15 = vector.shape_cast %14 : vector<1x8x128xf32> to vector<8x128xf32>
      %cst = arith.constant 0.176776692 : f32
      %16 = vector.broadcast %cst : f32 to vector<8x128xf32>
      %17 = arith.mulf %15, %16 : vector<8x128xf32>
      %c0_7 = arith.constant 0 : index
      %c0_8 = arith.constant 0 : index
      %c0_9 = arith.constant 0 : index
      %18 = vector.load %arg5[%c0_7, %c0_8, %c0_9] : memref<1x8x128xf32, #tpu.memory_space<vmem>>, vector<1x8x128xf32>
      %19 = vector.shape_cast %18 : vector<1x8x128xf32> to vector<8x128xf32>
      %cst_10 = arith.constant dense<0.000000e+00> : vector<8x8xf32>
      %20 = tpu.matmul %17, %19, %cst_10 {dimension_numbers = #tpu.dot_dimension_numbers<[1], [1], [0], [0], [0, 0, 1, 0], [], []>} : vector<8x128xf32>, vector<8x128xf32>, vector<8x8xf32> -> vector<8x8xf32>
      %21 = tpu.iota {dimensions = array<i32: 1>} : vector<8x8xi32>
      %22 = vector.broadcast %5 : i32 to vector<8x8xi32>
      %23 = arith.addi %22, %21 : vector<8x8xi32>
      %24 = vector.broadcast %4 : i32 to vector<8x8xi32>
      %25 = arith.cmpi slt, %23, %24 : vector<8x8xi32>
      %cst_11 = arith.constant -1.000000e+06 : f32
      %26 = vector.broadcast %cst_11 : f32 to vector<8x8xf32>
      %27 = arith.select %25, %20, %26 : vector<8x8xi1>, vector<8x8xf32>
      %c0_12 = arith.constant 0 : index
      %c0_13 = arith.constant 0 : index
      %28 = vector.load %arg8[%c0_12, %c0_13] : memref<8x1xf32, #tpu.memory_space<vmem>>, vector<8x1xf32>
      %cst_14 = arith.constant dense<0xFF800000> : vector<8xf32>
      %29 = vector.multi_reduction <maximumf>, %27, %cst_14 [1] : vector<8x8xf32> to vector<8xf32>
      %30 = vector.shape_cast %29 : vector<8xf32> to vector<8x1xf32>
      %31 = arith.maximumf %28, %30 : vector<8x1xf32>
      %32 = arith.subf %28, %31 : vector<8x1xf32>
      %33 = math.exp %32 : vector<8x1xf32>
      %34 = vector.broadcast %31 : vector<8x1xf32> to vector<8x8xf32>
      %35 = arith.subf %27, %34 : vector<8x8xf32>
      %36 = math.exp %35 : vector<8x8xf32>
      %c0_15 = arith.constant 0 : index
      %c0_16 = arith.constant 0 : index
      %37 = vector.load %arg9[%c0_15, %c0_16] : memref<8x1xf32, #tpu.memory_space<vmem>>, vector<8x1xf32>
      %38 = arith.mulf %33, %37 : vector<8x1xf32>
      %cst_17 = arith.constant dense<0.000000e+00> : vector<8xf32>
      %39 = vector.multi_reduction <add>, %36, %cst_17 [1] : vector<8x8xf32> to vector<8xf32>
      %40 = vector.shape_cast %39 : vector<8xf32> to vector<8x1xf32>
      %41 = arith.addf %38, %40 : vector<8x1xf32>
      %c0_18 = arith.constant 0 : index
      %c0_19 = arith.constant 0 : index
      %42 = vector.load %arg9[%c0_18, %c0_19] : memref<8x1xf32, #tpu.memory_space<vmem>>, vector<8x1xf32>
      tpu.vector_store %arg9[%c0_18, %c0_19], %41 {strides = array<i32>} : memref<8x1xf32, #tpu.memory_space<vmem>>, vector<8x1xf32>,
      %c0_20 = arith.constant 0 : index
      %c0_21 = arith.constant 0 : index
      %43 = vector.load %arg10[%c0_20, %c0_21] : memref<8x128xf32, #tpu.memory_space<vmem>>, vector<8x128xf32>
      %44 = vector.broadcast %33 : vector<8x1xf32> to vector<8x128xf32>
      %45 = arith.mulf %44, %43 : vector<8x128xf32>
      %c0_22 = arith.constant 0 : index
      %c0_23 = arith.constant 0 : index
      %c0_24 = arith.constant 0 : index
      %46 = vector.load %arg6[%c0_22, %c0_23, %c0_24] : memref<1x8x128xf32, #tpu.memory_space<vmem>>, vector<1x8x128xf32>
      %47 = vector.shape_cast %46 : vector<1x8x128xf32> to vector<8x128xf32>
      %cst_25 = arith.constant dense<0.000000e+00> : vector<8x128xf32>
      %48 = tpu.matmul %36, %47, %cst_25 {dimension_numbers = #tpu.dot_dimension_numbers<[1], [0], [0], [1], [0, 0, 1, 1], [], []>} : vector<8x8xf32>, vector<8x128xf32>, vector<8x128xf32> -> vector<8x128xf32>
      %49 = arith.addf %45, %48 : vector<8x128xf32>
      %c0_26 = arith.constant 0 : index
      %c0_27 = arith.constant 0 : index
      %50 = vector.load %arg10[%c0_26, %c0_27] : memref<8x128xf32, #tpu.memory_space<vmem>>, vector<8x128xf32>
      tpu.vector_store %arg10[%c0_26, %c0_27], %49 {strides = array<i32>} : memref<8x128xf32, #tpu.memory_space<vmem>>, vector<8x128xf32>,
      %c0_28 = arith.constant 0 : index
      %c0_29 = arith.constant 0 : index
      %51 = vector.load %arg8[%c0_28, %c0_29] : memref<8x1xf32, #tpu.memory_space<vmem>>, vector<8x1xf32>
      tpu.vector_store %arg8[%c0_28, %c0_29], %31 {strides = array<i32>} : memref<8x1xf32, #tpu.memory_space<vmem>>, vector<8x1xf32>,
    } else {
    }
    %c0_i32_3 = arith.constant 0 : i32
    %11 = arith.cmpi eq, %arg2, %c0_i32_3 : i32
    %12 = arith.extui %11 : i1 to i32
    %c0_i32_4 = arith.constant 0 : i32
    %13 = arith.cmpi ne, %12, %c0_i32_4 : i32
    scf.if %13 {
      %c0 = arith.constant 0 : index
      %c0_5 = arith.constant 0 : index
      %14 = vector.load %arg9[%c0, %c0_5] : memref<8x1xf32, #tpu.memory_space<vmem>>, vector<8x1xf32>
      %15 = tpu.reciprocal %14 {approx = true} : vector<8x1xf32> -> vector<8x1xf32>
      %c0_6 = arith.constant 0 : index
      %c0_7 = arith.constant 0 : index
      %16 = vector.load %arg10[%c0_6, %c0_7] : memref<8x128xf32, #tpu.memory_space<vmem>>, vector<8x128xf32>
      %17 = vector.broadcast %15 : vector<8x1xf32> to vector<8x128xf32>
      %18 = arith.mulf %16, %17 : vector<8x128xf32>
      %c0_8 = arith.constant 0 : index
      %c0_9 = arith.constant 0 : index
      %c0_10 = arith.constant 0 : index
      %19 = vector.load %arg7[%c0_8, %c0_9, %c0_10] : memref<1x8x128xf32, #tpu.memory_space<vmem>>, vector<1x8x128xf32>
      %20 = vector.shape_cast %19 : vector<1x8x128xf32> to vector<8x128xf32>
      %21 = vector.shape_cast %18 : vector<8x128xf32> to vector<1x8x128xf32>
      tpu.vector_store %arg7[%c0_8, %c0_9, %c0_10], %21 {strides = array<i32>} : memref<1x8x128xf32, #tpu.memory_space<vmem>>, vector<1x8x128xf32>,
    } else {
    }
    return
  }
  func.func @transform_0(%arg0: i32, %arg1: i32, %arg2: i32, %arg3: memref<2xi32, #tpu.memory_space<smem>>) -> (i32, i32, i32) {
    %c0_i32 = arith.constant 0 : i32
    %c0_i32_0 = arith.constant 0 : i32
    return %arg0, %arg1, %c0_i32 : i32, i32, i32
  }
  func.func @transform_1(%arg0: i32, %arg1: i32, %arg2: i32, %arg3: memref<2xi32, #tpu.memory_space<smem>>) -> (i32, i32, i32) {
    %c0_i32 = arith.constant 0 : i32
    %c0_i32_0 = arith.constant 0 : i32
    return %arg0, %arg2, %c0_i32 : i32, i32, i32
  }
  func.func @transform_2(%arg0: i32, %arg1: i32, %arg2: i32, %arg3: memref<2xi32, #tpu.memory_space<smem>>) -> (i32, i32, i32) {
    %c0_i32 = arith.constant 0 : i32
    %c0_i32_0 = arith.constant 0 : i32
    return %arg0, %arg2, %c0_i32 : i32, i32, i32
  }
  func.func @transform_3(%arg0: i32, %arg1: i32, %arg2: i32, %arg3: memref<2xi32, #tpu.memory_space<smem>>) -> (i32, i32, i32) {
    %c0_i32 = arith.constant 0 : i32
    %c0_i32_0 = arith.constant 0 : i32
    return %arg0, %arg1, %c0_i32 : i32, i32, i32
  }
}

</mosaic_0001>

<llo_original>
// kernel: dot_product_attention.1
$region0: #{dot_product_attention.1}
  #allocation0 [shape = 'u32[]', space=smem, size = 0x4, offset = 0x4, fixed_abs, tag = 'smem constant byte address 0x4 - core index']
  #allocation1 [shape = 'u32[144,128]{1,0:T(1,128)}', space=vmem, size = 0x12000, scoped, tag = 'internal scratch']
  #allocation2 [shape = 'f32[8,1]{1,0:T(8,128)}', space=vmem, size = 0x1000, scoped, tag = 'scratch operand']
  #allocation3 [shape = 'f32[8,1]{1,0:T(8,128)}', space=vmem, size = 0x1000, scoped, tag = 'scratch operand']
  #allocation4 [shape = 'f32[8,128]{1,0:T(8,128)}', space=vmem, size = 0x1000, scoped, tag = 'scratch operand']
  #allocation5 [shape = 's32[1]{0}', space=sflag, size = 0x4, scoped, tag = 'scoped memory for dot_product_attention.1']
  #allocation6 [shape = 'u8[512]{0}', space=smem, size = 0x200, scoped, tag = 'prefetched SMEM operand 0']
  %s0 = inlined_call_operand.vmem [shape: s32[2], index: 0, kind: input, shape index: {}]
  %s1 = inlined_call_operand.vmem [shape: f32[2,8,128], index: 1, kind: input, shape index: {}]
  %s2 = inlined_call_operand.vmem [shape: f32[2,8,128], index: 2, kind: input, shape index: {}]
  %s3 = inlined_call_operand.vmem [shape: f32[2,8,128], index: 3, kind: input, shape index: {}]
  %s4 = inlined_call_operand.hbm [shape: f32[2,8,128], index: 4, kind: output, shape index: {}]
  %s5 = sld [smem:[#allocation0]]
  $region57: #{dot_product_attention.1} parent=0
    _
  %s7 = ssub.s32 1, %s5
  %s8 = scalar_select 0, %s7, %s5
  %s9 = sshll.u32 %s0, 4
  %s10 = int_to_ptr.vmem [resolvable:$true] %s9
  %12 = dma.vmem_to_smem %s10, 16, [#allocation6], [#allocation5]
  %13 = dma.done [#allocation5], 16
  %14 = sfence
  $region1: #{dot_product_attention.1} parent=0
    #allocation7 [shape = 'u8[8192]{0}', space=vmem, size = 0x2000, scoped, tag = 'output window, operand 0']
    #allocation8 [shape = 's32[2]{0}', space=sflag, size = 0x8, scoped, tag = 'scoped memory for dot_product_attention.1']
    %15 = vsyncpa [#allocation8], 0
    %s16 = scalar_lea.sflag [#allocation8], 1
    %17 = vsyncpa %s16, 0
    loop: start=0, step=1, limit=4
    $region2: #{dot_product_attention.1} parent=1 // loop_pre_header
      _
    $region3: #{dot_product_attention.1} parent=1 // loop_header
      %s19 = sphi 0, %s23
      %p20 = scmp.ge.s32.totalorder %s19, 4
      %s26 = sphi 0, %s45
      %s27 = sphi 0, %s41
      %s28 = sphi 0, %s37
      %s29 = sphi 0, %s26
      %s30 = sphi 0, %s27
      %s31 = sphi 0, %s28
      %s32 = sphi 0, %s29
      %s33 = sphi 0, %s30
      %s34 = sphi 0, %s31
      %s50 = sphi 0, %s52
      %s53 = sphi 0, %s50
      %s54 = sphi 0, %s53
      %s70 = sphi 0, %s54
      %s78 = sphi 0, %s80
      %s81 = sphi 0, %s78
      %s82 = sphi 0, %s81
      %s98 = sphi 0, %s82
      %s106 = sphi 0, %s108
      %s109 = sphi 0, %s106
      %s110 = sphi 0, %s109
      %s126 = sphi 0, %s110
      %s134 = sphi 0, %s136
      %s137 = sphi 0, %s134
      %s138 = sphi 0, %s137
      %s154 = sphi 0, %s138
    $region4: #{dot_product_attention.1} parent=1 // loop_header_branch
      %22 = sbr.rel (%p20) target = $region8
    $region5: #{dot_product_attention.1} parent=1 // loop_body
      %s24 = ssub.s32 %s19, 1
      %s25 = ssub.s32 %s19, 2
      %s35 = sadd.s32 1, %s28
      %p36 = scmp.ge.s32.totalorder %s35, 1
      %s37 = scalar_select %p36, 0, %s35
      %s38 = sadd.s32 1, %s27
      %s39 = scalar_select %p36, %s38, %s27
      %p40 = scmp.ge.s32.totalorder %s39, 1
      %s41 = scalar_select %p40, 0, %s39
      %s42 = sadd.s32 1, %s26
      %s43 = scalar_select %p40, %s42, %s26
      %p44 = scmp.ge.s32.totalorder %s43, 2
      %s45 = scalar_select %p44, 0, %s43
      %s46 = ssub.s32 %s26, %s45
      %s47 = ssub.s32 %s27, %s41
      %s48 = sor.u32 %s46, %s47
      %p49 = scmp.eq.s32.totalorder %s48, 0
      %s51 = sadd.s32 %s50, 1
      %s52 = scalar_select %p49, %s50, %s51
      %p55 = pneg %p49
      %p56 = scmp.eq.s32.totalorder %s19, 1
      %p57 = por %p55, %p56
      %p58 = scmp.ne.s32.totalorder %s50, %s53
      %p59 = scmp.eq.s32.totalorder %s19, 0
      %p60 = por %p58, %p59
      %p61 = scmp.ne.s32.totalorder %s50, %s53
      %p62 = scmp.eq.s32.totalorder %s24, 1
      %p63 = por %p61, %p62
      %p64 = scmp.ne.s32.totalorder %s53, %s54
      %p65 = scmp.eq.s32.totalorder %s24, 0
      %p66 = por %p64, %p65
      %p67 = scmp.ne.s32.totalorder %s53, %s54
      %p68 = scmp.eq.s32.totalorder %s25, 1
      %p69 = por %p67, %p68
      %p71 = scmp.ne.s32.totalorder %s54, %s70
      %p72 = scmp.eq.s32.totalorder %s25, 0
      %p73 = por %p71, %p72
      %s74 = ssub.s32 %s26, %s45
      %s75 = ssub.s32 %s28, %s37
      %s76 = sor.u32 %s74, %s75
      %p77 = scmp.eq.s32.totalorder %s76, 0
      %s79 = sadd.s32 %s78, 1
      %s80 = scalar_select %p77, %s78, %s79
      %p83 = pneg %p77
      %p84 = scmp.eq.s32.totalorder %s19, 1
      %p85 = por %p83, %p84
      %p86 = scmp.ne.s32.totalorder %s78, %s81
      %p87 = scmp.eq.s32.totalorder %s19, 0
      %p88 = por %p86, %p87
      %p89 = scmp.ne.s32.totalorder %s78, %s81
      %p90 = scmp.eq.s32.totalorder %s24, 1
      %p91 = por %p89, %p90
      %p92 = scmp.ne.s32.totalorder %s81, %s82
      %p93 = scmp.eq.s32.totalorder %s24, 0
      %p94 = por %p92, %p93
      %p95 = scmp.ne.s32.totalorder %s81, %s82
      %p96 = scmp.eq.s32.totalorder %s25, 1
      %p97 = por %p95, %p96
      %p99 = scmp.ne.s32.totalorder %s82, %s98
      %p100 = scmp.eq.s32.totalorder %s25, 0
      %p101 = por %p99, %p100
      %s102 = ssub.s32 %s26, %s45
      %s103 = ssub.s32 %s28, %s37
      %s104 = sor.u32 %s102, %s103
      %p105 = scmp.eq.s32.totalorder %s104, 0
      %s107 = sadd.s32 %s106, 1
      %s108 = scalar_select %p105, %s106, %s107
      %p111 = pneg %p105
      %p112 = scmp.eq.s32.totalorder %s19, 1
      %p113 = por %p111, %p112
      %p114 = scmp.ne.s32.totalorder %s106, %s109
      %p115 = scmp.eq.s32.totalorder %s19, 0
      %p116 = por %p114, %p115
      %p117 = scmp.ne.s32.totalorder %s106, %s109
      %p118 = scmp.eq.s32.totalorder %s24, 1
      %p119 = por %p117, %p118
      %p120 = scmp.ne.s32.totalorder %s109, %s110
      %p121 = scmp.eq.s32.totalorder %s24, 0
      %p122 = por %p120, %p121
      %p123 = scmp.ne.s32.totalorder %s109, %s110
      %p124 = scmp.eq.s32.totalorder %s25, 1
      %p125 = por %p123, %p124
      %p127 = scmp.ne.s32.totalorder %s110, %s126
      %p128 = scmp.eq.s32.totalorder %s25, 0
      %p129 = por %p127, %p128
      %s130 = ssub.s32 %s26, %s45
      %s131 = ssub.s32 %s27, %s41
      %s132 = sor.u32 %s130, %s131
      %p133 = scmp.eq.s32.totalorder %s132, 0
      %s135 = sadd.s32 %s134, 1
      %s136 = scalar_select %p133, %s134, %s135
      %p139 = pneg %p133
      %p140 = scmp.eq.s32.totalorder %s19, 1
      %p141 = por %p139, %p140
      %p142 = scmp.ne.s32.totalorder %s134, %s137
      %p143 = scmp.eq.s32.totalorder %s19, 0
      %p144 = por %p142, %p143
      %p145 = scmp.ne.s32.totalorder %s134, %s137
      %p146 = scmp.eq.s32.totalorder %s24, 1
      %p147 = por %p145, %p146
      %p148 = scmp.ne.s32.totalorder %s137, %s138
      %p149 = scmp.eq.s32.totalorder %s24, 0
      %p150 = por %p148, %p149
      %p151 = scmp.ne.s32.totalorder %s137, %s138
      %p152 = scmp.eq.s32.totalorder %s25, 1
      %p153 = por %p151, %p152
      %p155 = scmp.ne.s32.totalorder %s138, %s154
      %p156 = scmp.eq.s32.totalorder %s25, 0
      %p157 = por %p155, %p156
      %p158 = scmp.le.s32.totalorder 1, %s19
      %p159 = scmp.lt.s32.totalorder %s19, 3
      %p160 = pnand %p158, %p159
      %p161 = pneg %p160
      // Predicated region
      $region9: #{dot_product_attention.1} parent=5 // pred_check
        _
      $region10: #{dot_product_attention.1} parent=5 // pred_check_branch
        %163 = sbr.rel (%p160) target = $region12
      $region11: #{dot_product_attention.1} parent=5 // pred_region
        %s164 = ssub.s32 %s19, 1
      $region12: #{dot_product_attention.1} parent=5 // pred_fallthru
        _
      %p165 = scmp.lt.s32.totalorder %s19, 2
      // Predicated region
      $region13: #{dot_product_attention.1} parent=5 // pred_check
        %p166 = pneg %p165
      $region14: #{dot_product_attention.1} parent=5 // pred_check_branch
        %168 = sbr.rel (%p166) target = $region16
      $region15: #{dot_product_attention.1} parent=5 // pred_region
        // Predicated region
        $region17: #{dot_product_attention.1} parent=15 // pred_check
          %p169 = pneg %p60
        $region18: #{dot_product_attention.1} parent=15 // pred_check_branch
          %171 = sbr.rel (%p169) target = $region20
        $region19: #{dot_product_attention.1} parent=15 // pred_region
          %p172 = scmp.lt.s32.totalorder %s26, 1
          %s173 = scalar_select %p172, %s26, 1
          %p174 = scmp.lt.s32.totalorder %s27, 0
          %s175 = scalar_select %p174, %s27, 0
          %s176 = sadd.s32 %s175, %s173
          %s177 = smul.addr %s176, 8
          %s178 = scalar_lea.vmem %s1, %s177
        $region20: #{dot_product_attention.1} parent=15 // pred_fallthru
          _
        // Predicated region
        $region21: #{dot_product_attention.1} parent=15 // pred_check
          %p179 = pneg %p88
        $region22: #{dot_product_attention.1} parent=15 // pred_check_branch
          %181 = sbr.rel (%p179) target = $region24
        $region23: #{dot_product_attention.1} parent=15 // pred_region
          %p182 = scmp.lt.s32.totalorder %s26, 1
          %s183 = scalar_select %p182, %s26, 1
          %p184 = scmp.lt.s32.totalorder %s28, 0
          %s185 = scalar_select %p184, %s28, 0
          %s186 = sadd.s32 %s185, %s183
          %s187 = smul.addr %s186, 8
          %s188 = scalar_lea.vmem %s2, %s187
        $region24: #{dot_product_attention.1} parent=15 // pred_fallthru
          _
        // Predicated region
        $region25: #{dot_product_attention.1} parent=15 // pred_check
          %p189 = pneg %p116
        $region26: #{dot_product_attention.1} parent=15 // pred_check_branch
          %191 = sbr.rel (%p189) target = $region28
        $region27: #{dot_product_attention.1} parent=15 // pred_region
          %p192 = scmp.lt.s32.totalorder %s26, 1
          %s193 = scalar_select %p192, %s26, 1
          %p194 = scmp.lt.s32.totalorder %s28, 0
          %s195 = scalar_select %p194, %s28, 0
          %s196 = sadd.s32 %s195, %s193
          %s197 = smul.addr %s196, 8
          %s198 = scalar_lea.vmem %s3, %s197
        $region28: #{dot_product_attention.1} parent=15 // pred_fallthru
          _
      $region16: #{dot_product_attention.1} parent=5 // pred_fallthru
        _
      %p199 = scmp.le.s32.totalorder 1, %s19
      %p200 = scmp.lt.s32.totalorder %s19, 3
      %p201 = pnand %p199, %p200
      %p202 = pneg %p201
      // Predicated region
      $region29: #{dot_product_attention.1} parent=5 // pred_check
        _
      $region30: #{dot_product_attention.1} parent=5 // pred_check_branch
        %204 = sbr.rel (%p201) target = $region32
      $region31: #{dot_product_attention.1} parent=5 // pred_region
        %s205 = ssub.s32 %s19, 1
        %p206 = scmp.lt.s32.totalorder %s29, 1
        %s207 = scalar_select %p206, %s29, 1
        %p208 = scmp.lt.s32.totalorder %s30, 0
        %s209 = scalar_select %p208, %s30, 0
        %s210 = sadd.s32 %s209, %s207
        %s211 = smul.addr %s210, 8
        %s212 = scalar_lea.vmem %s1, %s211
        %p213 = pneg %p66
        %p214 = pneg %p63
        %p215 = scmp.lt.s32.totalorder %s29, 1
        %s216 = scalar_select %p215, %s29, 1
        %p217 = scmp.lt.s32.totalorder %s31, 0
        %s218 = scalar_select %p217, %s31, 0
        %s219 = sadd.s32 %s218, %s216
        %s220 = smul.addr %s219, 8
        %s221 = scalar_lea.vmem %s2, %s220
        %p222 = pneg %p94
        %p223 = pneg %p91
        %p224 = scmp.lt.s32.totalorder %s29, 1
        %s225 = scalar_select %p224, %s29, 1
        %p226 = scmp.lt.s32.totalorder %s31, 0
        %s227 = scalar_select %p226, %s31, 0
        %s228 = sadd.s32 %s227, %s225
        %s229 = smul.addr %s228, 8
        %s230 = scalar_lea.vmem %s3, %s229
        %p231 = pneg %p122
        %p232 = pneg %p119
        %p233 = pneg %p150
        %p234 = pneg %p147
        %s235 = sand.u32 %s137, 1
        %s236 = scalar_lea.sflag [#allocation8], %s235
        %s237 = sand.u32 %s137, 1
        %s238 = smul.addr %s237, 8
        %s239 = scalar_lea.vmem [#allocation7], %s238
        %p240 = scmp.lt.s32.totalorder %s29, 1
        %s241 = scalar_select %p240, %s29, 1
        %p242 = scmp.lt.s32.totalorder %s30, 0
        %s243 = scalar_select %p242, %s30, 0
        %s244 = sadd.s32 %s243, %s241
        %s245 = smul.addr %s244, 8
        %s246 = scalar_lea.vmem %s1, %s245
        %p247 = scmp.lt.s32.totalorder %s29, 1
        %s248 = scalar_select %p247, %s29, 1
        %p249 = scmp.lt.s32.totalorder %s31, 0
        %s250 = scalar_select %p249, %s31, 0
        %s251 = sadd.s32 %s250, %s248
        %s252 = smul.addr %s251, 8
        %s253 = scalar_lea.vmem %s2, %s252
        %p254 = scmp.lt.s32.totalorder %s29, 1
        %s255 = scalar_select %p254, %s29, 1
        %p256 = scmp.lt.s32.totalorder %s31, 0
        %s257 = scalar_select %p256, %s31, 0
        %s258 = sadd.s32 %s257, %s255
        %s259 = smul.addr %s258, 8
        %s260 = scalar_lea.vmem %s3, %s259
        %p261 = scmp.eq.s32.totalorder %s31, 0
        // Predicated region
        $region33: #{dot_product_attention.1} parent=31 // pred_check
          %p262 = pneg %p261
        $region34: #{dot_product_attention.1} parent=31 // pred_check_branch
          %264 = sbr.rel (%p262) target = $region36
        $region35: #{dot_product_attention.1} parent=31 // pred_region
          %vm265 = vcmask 7168
          %266 = vst.msk [vmem:[#allocation2] sm:$0xff] %vm265, -inf
          %267 = vst.msk [vmem:[#allocation3] sm:$0xff] %vm265, 0.0
          %268 = vst [vmem:[#allocation4] sm:$0xff] 0.0
        $region36: #{dot_product_attention.1} parent=31 // pred_fallthru
          _
        %s269 = sld [smem:[#allocation6 + %s29]]
        %s270 = smul.u32 %s31, 8
        %p271 = scmp.lt.s32.totalorder %s270, %s269
        %p272 = por %p271, %p261
        // Predicated region
        $region37: #{dot_product_attention.1} parent=31 // pred_check
          %p273 = pneg %p272
        $region38: #{dot_product_attention.1} parent=31 // pred_check_branch
          %275 = sbr.rel (%p273) target = $region40
        $region39: #{dot_product_attention.1} parent=31 // pred_region
          %v276 = vld [vmem:[%s246] sm:$0xff]
          %v277 = vmul.f32 %v276, 0.17677669
          %v278 = vld [vmem:[%s253] sm:$0xff]
          %279 = vmatprep.subr.mxu0 0.0
          %280 = vmatpush1.xpose.msra.mxu0 %v278
          %281 = vmatprep.subr.mxu0 0.0
          %282 = vmatpush1.xpose.msra.mxu0 0.0
          %283 = vmatprep.subr.mxu0 0.0
          %284 = vmatpush1.xpose.msra.mxu0 0.0
          %285 = vmatprep.subr.mxu0 0.0
          %286 = vmatpush1.xpose.msra.mxu0 0.0
          %287 = vmatprep.subr.mxu0 0.0
          %288 = vmatpush1.xpose.msra.mxu0 0.0
          %289 = vmatprep.subr.mxu0 0.0
          %290 = vmatpush1.xpose.msra.mxu0 0.0
          %291 = vmatprep.subr.mxu0 0.0
          %292 = vmatpush1.xpose.msra.mxu0 0.0
          %293 = vmatprep.subr.mxu0 0.0
          %294 = vmatpush1.xpose.msra.mxu0 0.0
          %295 = vmatprep.subr.mxu0 0.0
          %296 = vmatpush1.xpose.msra.mxu0 0.0
          %297 = vmatprep.subr.mxu0 0.0
          %298 = vmatpush1.xpose.msra.mxu0 0.0
          %299 = vmatprep.subr.mxu0 0.0
          %300 = vmatpush1.xpose.msra.mxu0 0.0
          %301 = vmatprep.subr.mxu0 0.0
          %302 = vmatpush1.xpose.msra.mxu0 0.0
          %303 = vmatprep.subr.mxu0 0.0
          %304 = vmatpush1.xpose.msra.mxu0 0.0
          %305 = vmatprep.subr.mxu0 0.0
          %306 = vmatpush1.xpose.msra.mxu0 0.0
          %307 = vmatprep.subr.mxu0 0.0
          %308 = vmatpush1.xpose.msra.mxu0 0.0
          %309 = vmatprep.subr.mxu0 0.0
          %310 = vmatpush1.xpose.msra.mxu0 0.0
          %311 = vmatprep.subr.mxu0 0.0
          %312 = vmatpush1.xpose.msra.mxu0 0.0
          %313 = vmatprep.subr.mxu0 0.0
          %314 = vmatpush1.xpose.msra.mxu0 0.0
          %315 = vmatprep.subr.mxu0 0.0
          %316 = vmatpush1.xpose.msra.mxu0 0.0
          %317 = vmatprep.subr.mxu0 0.0
          %318 = vmatpush1.xpose.msra.mxu0 0.0
          %319 = vmatprep.subr.mxu0 0.0
          %320 = vmatpush1.xpose.msra.mxu0 0.0
          %321 = vmatprep.subr.mxu0 0.0
          %322 = vmatpush1.xpose.msra.mxu0 0.0
          %323 = vmatprep.subr.mxu0 0.0
          %324 = vmatpush1.xpose.msra.mxu0 0.0
          %325 = vmatprep.subr.mxu0 0.0
          %326 = vmatpush1.xpose.msra.mxu0 0.0
          %327 = vmatprep.subr.mxu0 0.0
          %328 = vmatpush1.xpose.msra.mxu0 0.0
          %329 = vmatprep.subr.mxu0 0.0
          %330 = vmatpush1.xpose.msra.mxu0 0.0
          %331 = vmatprep.subr.mxu0 0.0
          %332 = vmatpush1.xpose.msra.mxu0 0.0
          %333 = vmatprep.subr.mxu0 0.0
          %334 = vmatpush1.xpose.msra.mxu0 0.0
          %335 = vmatprep.subr.mxu0 0.0
          %336 = vmatpush1.xpose.msra.mxu0 0.0
          %337 = vmatprep.subr.mxu0 0.0
          %338 = vmatpush1.xpose.msra.mxu0 0.0
          %339 = vmatprep.subr.mxu0 0.0
          %340 = vmatpush1.xpose.msra.mxu0 0.0
          %341 = vmatprep.subr.mxu0 0.0
          %342 = vmatpush1.xpose.msra.mxu0 0.0
          %343 = vmatprep.mubr.f32.mxu0 0.0
          %344 = vmatmul.mubr.f32.gmra.mrb[0].mxu0 %v277
          %v345 = vpop.f32.mrb[0].mxu0
          %v346 = vadd.f32 0.0, %v345
          %v347 = vpop.f32.mrb[0].mxu0
          %348 = vdwg.mxu0
          %v349 = vlaneseq
          %v350 = vand.u32 %v349, 127
          %v351 = vstv %s270
          %v352 = vadd.s32 %v351, %v350
          %v353 = vstv %s269
          %vm354 = vcmp.lt.s32.totalorder %v352, %v353
          %v355 = vsel %vm354, %v346, -1000000.0
          %v356 = vld [vmem:[#allocation2] sm:$0xff]
          %vm357 = vcmask 64512
          %v358 = vsel %vm357, %v355, -inf
          %359 = vmax.xlane.f32.xlu0 %v358
          %v360 = vpop.xlane.xlu0 %359
          %v361 = vmax.f32 %v356, %v360
          %v362 = vsub.f32 %v356, %v361
          %v363 = vmul.f32 %v362, 1.442695
          %v364 = vpow.pop %v363
          %366 = vset.pattern.permute.xlu0 0
          %367 = vperm.xlu0 %366, %v361
          %v368 = vpop.permute.xlu0 %367
          %v370 = vsub.f32 %v355, %v368
          %v371 = vmul.f32 %v370, 1.442695
          %v372 = vpow.pop %v371
          %v373 = vld [vmem:[#allocation3] sm:$0xff]
          %v374 = vmul.f32 %v364, %v373
          %v375 = vsel %vm357, %v372, 0.0
          %376 = vadd.xlane.f32.xlu0 %v375
          %v377 = vpop.xlane.xlu0 %376
          %v378 = vadd.f32 %v374, %v377
          %vm379 = vcmask 7168
          %380 = vst.msk [vmem:[#allocation3] sm:$0xff] %vm379, %v378
          %v381 = vld [vmem:[#allocation4] sm:$0xff]
          %383 = vset.pattern.permute.xlu0 0
          %384 = vperm.xlu0 %383, %v364
          %v385 = vpop.permute.xlu0 %384
          %v387 = vmul.f32 %v385, %v381
          %v388 = vld [vmem:[%s260] sm:$0xff]
          %v390 = vsel %vm357, %v372, 0
          %392 = vmatprep.subr.mxu0 0.0
          %393 = vmatpush1.msra.mxu0 %v388
          %394 = vmatprep.subr.mxu0 0.0
          %395 = vmatpush1.msra.mxu0 0.0
          %396 = vmatprep.subr.mxu0 0.0
          %397 = vmatpush1.msra.mxu0 0.0
          %398 = vmatprep.subr.mxu0 0.0
          %399 = vmatpush1.msra.mxu0 0.0
          %400 = vmatprep.subr.mxu0 0.0
          %401 = vmatpush1.msra.mxu0 0.0
          %402 = vmatprep.subr.mxu0 0.0
          %403 = vmatpush1.msra.mxu0 0.0
          %404 = vmatprep.subr.mxu0 0.0
          %405 = vmatpush1.msra.mxu0 0.0
          %406 = vmatprep.subr.mxu0 0.0
          %407 = vmatpush1.msra.mxu0 0.0
          %408 = vmatprep.subr.mxu0 0.0
          %409 = vmatpush1.msra.mxu0 0.0
          %410 = vmatprep.subr.mxu0 0.0
          %411 = vmatpush1.msra.mxu0 0.0
          %412 = vmatprep.subr.mxu0 0.0
          %413 = vmatpush1.msra.mxu0 0.0
          %414 = vmatprep.subr.mxu0 0.0
          %415 = vmatpush1.msra.mxu0 0.0
          %416 = vmatprep.subr.mxu0 0.0
          %417 = vmatpush1.msra.mxu0 0.0
          %418 = vmatprep.subr.mxu0 0.0
          %419 = vmatpush1.msra.mxu0 0.0
          %420 = vmatprep.subr.mxu0 0.0
          %421 = vmatpush1.msra.mxu0 0.0
          %422 = vmatprep.subr.mxu0 0.0
          %423 = vmatpush1.msra.mxu0 0.0
          %424 = vmatprep.subr.mxu0 0.0
          %425 = vmatpush1.msra.mxu0 0.0
          %426 = vmatprep.subr.mxu0 0.0
          %427 = vmatpush1.msra.mxu0 0.0
          %428 = vmatprep.subr.mxu0 0.0
          %429 = vmatpush1.msra.mxu0 0.0
          %430 = vmatprep.subr.mxu0 0.0
          %431 = vmatpush1.msra.mxu0 0.0
          %432 = vmatprep.subr.mxu0 0.0
          %433 = vmatpush1.msra.mxu0 0.0
          %434 = vmatprep.subr.mxu0 0.0
          %435 = vmatpush1.msra.mxu0 0.0
          %436 = vmatprep.subr.mxu0 0.0
          %437 = vmatpush1.msra.mxu0 0.0
          %438 = vmatprep.subr.mxu0 0.0
          %439 = vmatpush1.msra.mxu0 0.0
          %440 = vmatprep.subr.mxu0 0.0
          %441 = vmatpush1.msra.mxu0 0.0
          %442 = vmatprep.subr.mxu0 0.0
          %443 = vmatpush1.msra.mxu0 0.0
          %444 = vmatprep.subr.mxu0 0.0
          %445 = vmatpush1.msra.mxu0 0.0
          %446 = vmatprep.subr.mxu0 0.0
          %447 = vmatpush1.msra.mxu0 0.0
          %448 = vmatprep.subr.mxu0 0.0
          %449 = vmatpush1.msra.mxu0 0.0
          %450 = vmatprep.subr.mxu0 0.0
          %451 = vmatpush1.msra.mxu0 0.0
          %452 = vmatprep.subr.mxu0 0.0
          %453 = vmatpush1.msra.mxu0 0.0
          %454 = vmatprep.subr.mxu0 0.0
          %455 = vmatpush1.msra.mxu0 0.0
          %456 = vmatprep.mubr.f32.mxu0 0.0
          %457 = vmatmul.mubr.f32.gmra.mrb[0].mxu0 %v390
          %v458 = vpop.f32.mrb[0].mxu0
          %v459 = vadd.f32 0.0, %v458
          %v460 = vpop.f32.mrb[0].mxu0
          %461 = vdwg.mxu0
          %v462 = vadd.f32 %v387, %v459
          %463 = vst [vmem:[#allocation4] sm:$0xff] %v462
          %464 = vst.msk [vmem:[#allocation2] sm:$0xff] %vm379, %v361
        $region40: #{dot_product_attention.1} parent=31 // pred_fallthru
          _
        // Predicated region
        $region41: #{dot_product_attention.1} parent=31 // pred_check
          %p465 = pneg %p261
        $region42: #{dot_product_attention.1} parent=31 // pred_check_branch
          %467 = sbr.rel (%p465) target = $region44
        $region43: #{dot_product_attention.1} parent=31 // pred_region
          %v468 = vld [vmem:[#allocation3] sm:$0xff]
          %v469 = vrcp.pop %v468
          %v470 = vld [vmem:[#allocation4] sm:$0xff]
          %472 = vset.pattern.permute.xlu0 0
          %473 = vperm.xlu0 %472, %v469
          %v474 = vpop.permute.xlu0 %473
          %v476 = vmul.f32 %v470, %v474
          %477 = vst [vmem:[%s239] sm:$0xff] %v476
        $region44: #{dot_product_attention.1} parent=31 // pred_fallthru
          _
        %s478 = sand.u32 %s137, 1
        %s479 = scalar_lea.sflag [#allocation8], %s478
        %s480 = sand.u32 %s137, 1
        %s481 = smul.addr %s480, 8
        %s482 = scalar_lea.vmem [#allocation7], %s481
        // Predicated region
        $region45: #{dot_product_attention.1} parent=31 // pred_check
          %p483 = pneg %p147
        $region46: #{dot_product_attention.1} parent=31 // pred_check_branch
          %485 = sbr.rel (%p483) target = $region48
        $region47: #{dot_product_attention.1} parent=31 // pred_region
          %s487 = ssub.s32 128, 128
          %488 = vsyncadd %s479, %s487
          %s489 = sadd.s32 %s30, %s29
          %s490 = smul.addr %s489, 128
          %s491 = scalar_lea.hbm %s4, %s490
          %s493 = sshll.u32 %s482, 4
          %s494 = int_to_ptr.vmem [resolvable:$true] %s493
          %496 = dma.vmem_to_hbm [thread:$0]  %s494, 128, %s491, %s479
        $region48: #{dot_product_attention.1} parent=31 // pred_fallthru
          _
      $region32: #{dot_product_attention.1} parent=5 // pred_fallthru
        _
      %p497 = scmp.le.s32.totalorder 2, %s19
      // Predicated region
      $region49: #{dot_product_attention.1} parent=5 // pred_check
        %p498 = pneg %p497
      $region50: #{dot_product_attention.1} parent=5 // pred_check_branch
        %500 = sbr.rel (%p498) target = $region52
      $region51: #{dot_product_attention.1} parent=5 // pred_region
        %s501 = ssub.s32 %s19, 2
        // Predicated region
        $region53: #{dot_product_attention.1} parent=51 // pred_check
          %p502 = pneg %p153
        $region54: #{dot_product_attention.1} parent=51 // pred_check_branch
          %504 = sbr.rel (%p502) target = $region56
        $region55: #{dot_product_attention.1} parent=51 // pred_region
          %s505 = sand.u32 %s138, 1
          %s506 = scalar_lea.sflag [#allocation8], %s505
          %s507 = sand.u32 %s138, 1
          %s508 = smul.addr %s507, 8
          %s509 = scalar_lea.vmem [#allocation7], %s508
          %510 = dma.done %s506, 128
        $region56: #{dot_product_attention.1} parent=51 // pred_fallthru
          _
      $region52: #{dot_product_attention.1} parent=5 // pred_fallthru
        _
    $region6: #{dot_product_attention.1} parent=1 // loop_footer
      %s23 = sadd.s32 1, %s19
    $region7: #{dot_product_attention.1} parent=1 // loop_footer_branch
      %18 = sbr.rel target = $region3
    $region8: #{dot_product_attention.1} parent=1 // loop_exit
      _
    %511 = vsyncpa [#allocation8], 1
    %s512 = scalar_lea.sflag [#allocation8], 1
    %513 = vsyncpa %s512, 1

</llo_original>
